<compile_context>
chip_gen: v7x
topology: tpu7x:2x2x1
jax: 0.10.0
libtpu: 0.0.40
codegen_flags: <defaults>
</compile_context>

<pallas_src>
import functools

import jax
import jax.numpy as jnp
import numpy as np
from jax.experimental import pallas as pl
from jax.experimental.pallas import tpu as pltpu

# Module hyper-parameters (deterministic, from __init__ defaults).
VAR, DIST, REG = 1.0, 1.0, 1.0
DTC, DBC = 0.1, 0.2

_RHS_ROWS = 8  # sublane-aligned MXU rhs: rows [1, p, p^2, 0, 0, 0, 0, 0]


def _instance_cluster_kernel(pred_ref, mask_ref, out_ref, acc_ref, *,
                             num_k, tile, rem, var, dist, reg, dtc, dbc):
    t = pl.program_id(0)
    last = pl.num_programs(0) - 1

    @pl.when(t == 0)
    def _init():
        acc_ref[...] = jnp.zeros_like(acc_ref)

    def _accumulate(p, m):
        # MXU rhs: rows [1, p, p*p, 0...], pixels stay lane-dense.
        prow = jnp.concatenate(
            [jnp.ones_like(p), p, p * p,
             jnp.zeros((_RHS_ROWS - 3, tile), jnp.float32)], axis=0)
        # One matmul replaces the per-polygon VPU broadcast-multiplies and
        # XLU cross-lane reductions of v2:
        #   (K, tile) @ (8, tile)^T -> (K, 8) = [count, sum(p), sum(p^2), ...]
        acc_ref[...] += jnp.einsum("kx,jx->kj", m, prow,
                                   preferred_element_type=jnp.float32)

    p_raw = pred_ref[...].astype(jnp.float32)   # (1, tile)
    m_raw = mask_ref[...].astype(jnp.float32)   # (K, tile); the widen is the
                                                # only per-element VPU op.

    if rem:
        # hw is not divisible by the tile: only the final, overhanging block
        # needs its stale/garbage lanes killed (select, so NaNs can't leak
        # through the matmul).  Hot (non-last) steps pay nothing.
        @pl.when(t != last)
        def _full_tile():
            _accumulate(p_raw, m_raw)

        @pl.when(t == last)
        def _edge_tile():
            lane = jax.lax.broadcasted_iota(jnp.int32, (1, tile), 1)
            ok = lane < rem                      # static remainder
            _accumulate(jnp.where(ok, p_raw, 0.0), jnp.where(ok, m_raw, 0.0))
    else:
        _accumulate(p_raw, m_raw)

    # --- finalize: tiny, fully vectorized, cold path --------------------
    @pl.when(t == last)
    def _finalize():
        acc = acc_ref[...]                                   # (K, 8)
        c, s1, s2 = acc[:, 0:1], acc[:, 1:2], acc[:, 2:3]
        # TODO(synk): torch yields NaN on an empty polygon mask; empty masks
        # here contribute 0 instead of poisoning the loss.
        c_safe = jnp.maximum(c, 1.0)
        mean = s1 / c_safe                                   # (K, 1)
        # TODO(synk): single-pass moments (s2 - s1*mean) can cancel badly when
        # |mean| >> std over huge H*W; switch to a compensated sum if needed.
        nrm2 = jnp.maximum(s2 - s1 * mean, 0.0)              # ||x - mean||^2
        hinge = jnp.maximum(jnp.sqrt(nrm2) - dtc, 0.0)
        var_loss = jnp.sum(hinge * hinge / c_safe) / num_k
        reg_loss = jnp.sum(jnp.abs(mean)) / num_k            # norm(scalar)==abs

        # Pairwise hinge on |mean_a - mean_b| over ordered pairs a != b.
        row = jax.lax.broadcasted_iota(jnp.int32, (num_k, num_k), 0)
        col = jax.lax.broadcasted_iota(jnp.int32, (num_k, num_k), 1)
        mean_a = jnp.broadcast_to(mean, (num_k, num_k))      # [a, b] -> mean_a
        # Transpose-free row copy: means on the diagonal, reduce sublanes.
        mean_b = jnp.sum(jnp.where(row == col, mean_a, 0.0),
                         axis=0, keepdims=True)              # (1, K): mean_b
        dh = jnp.maximum(2.0 * dbc - jnp.abs(mean_a - mean_b), 0.0)
        off_diag = (row != col).astype(jnp.float32)
        npairs = num_k * (num_k - 1)
        pair_scale = 1.0 / npairs if npairs else 0.0  # K==1: torch divides by 0
        dist_loss = jnp.sum(dh * dh * off_diag) * pair_scale

        out_ref[0, 0] = var * var_loss + dist * dist_loss + reg * reg_loss


def instance_cluster_loss(prediction, target, *, var=VAR, dist=DIST, reg=REG,
                          dtc=DTC, dbc=DBC, buffer_budget_bytes=24 << 20):
    """prediction: (H, W) float; target: (K, H, W) masks (nonzero = inside).

    Returns the scalar InstanceClusterLoss.  Tiles the flattened spatial axis
    as large as the VMEM budget allows (generation-safe for v5e/v6e/v7x).
    """
    prediction = jnp.asarray(prediction, jnp.float32)
    target = jnp.asarray(target)
    K = int(target.shape[0])
    hw = int(np.prod(prediction.shape))
    assert int(np.prod(target.shape[1:])) == hw

    # No conversion / padding pass over the mask volume: pure reshapes.
    pred_flat = prediction.reshape(1, hw)
    mask_flat = target.reshape(K, hw)

    # --- tile auto-sizing against a v7x-safe VMEM budget ------------------
    ms = mask_flat.dtype.itemsize
    # double-buffered mask + pred input blocks, plus the in-kernel (8, tile) rhs.
    bytes_per_px = 2 * (K * ms + 4) + _RHS_ROWS * 4
    budget_tile = max((buffer_budget_bytes // bytes_per_px) // 128 * 128, 128)
    if hw >= 256:
        hw_tile = int(min(budget_tile, (hw // 128) * 128))  # 128-aligned, <= hw
    else:
        hw_tile = hw                       # tiny image: one full-width block
    num_tiles = -(-hw // hw_tile)
    rem = hw % hw_tile                     # overhang handled in-kernel

    needed = bytes_per_px * hw_tile + (1 << 20)
    vmem_limit = int(min(64 << 20, max(32 << 20, needed + (8 << 20))))

    kernel = functools.partial(
        _instance_cluster_kernel,
        num_k=K, tile=hw_tile, rem=rem, var=float(var), dist=float(dist),
        reg=float(reg), dtc=float(dtc), dbc=float(dbc))

    out = pl.pallas_call(
        kernel,
        out_shape=jax.ShapeDtypeStruct((1, 1), jnp.float32),
        grid_spec=pltpu.PrefetchScalarGridSpec(
            num_scalar_prefetch=0,
            grid=(num_tiles,),
            in_specs=[
                pl.BlockSpec((1, hw_tile), lambda t: (0, t)),   # pred tile
                pl.BlockSpec((K, hw_tile), lambda t: (0, t)),   # all masks, tile t
            ],
            out_specs=pl.BlockSpec((1, 1), lambda t: (0, 0),
                                   memory_space=pltpu.MemorySpace.SMEM),
            scratch_shapes=[
                pltpu.VMEM((K, _RHS_ROWS), jnp.float32),  # [cnt, s1, s2, ...] per polygon
            ],
        ),
        compiler_params=pltpu.CompilerParams(
            dimension_semantics=("arbitrary",),   # accumulators carry over tiles
            vmem_limit_bytes=vmem_limit),
    )(pred_flat, mask_flat)
    return out[0, 0]


def _reference(prediction, target, var=VAR, dist=DIST, reg=REG, dtc=DTC, dbc=DBC):
    """NumPy transcription of the PyTorch forward (float64 reference)."""
    prediction = np.asarray(prediction, dtype=np.float64)
    masks = np.asarray(target) > 0.5
    means = []
    var_loss = 0.0
    for k in range(masks.shape[0]):
        vals = prediction[masks[k]]
        m = vals.mean()
        nrm = np.linalg.norm(vals - m)
        var_loss += max(nrm - dtc, 0.0) ** 2 / masks[k].sum()
        means.append(m)
    var_loss /= masks.shape[0]
    N = len(means)
    reg_loss = sum(abs(m) for m in means) / N
    dist_loss = sum(max(2.0 * dbc - abs(ea - eb), 0.0) ** 2
                    for i, ea in enumerate(means)
                    for j, eb in enumerate(means) if i != j) / (N * (N - 1))
    return var * var_loss + dist * dist_loss + reg * reg_loss


if __name__ == "__main__":
    K, H, W = 4, 16, 16
    key = jax.random.PRNGKey(0)
    k_pred, k_lbl = jax.random.split(key)

    prediction = jax.random.normal(k_pred, (H, W), dtype=jnp.float32)
    # Deterministic partition of the image into K non-empty instance masks.
    labels = jax.random.randint(k_lbl, (H, W), 0, K)
    target = (labels[None, :, :] == jnp.arange(K)[:, None, None]).astype(jnp.float32)

    loss = instance_cluster_loss(prediction, target)
    loss = jax.block_until_ready(loss)

    ref = _reference(np.asarray(prediction), np.asarray(target))
    # Tolerance accounts for the MXU moment matmul (possibly bf16 passes) vs
    # the float64 reference.
    np.testing.assert_allclose(float(loss), float(ref), rtol=5e-3, atol=1e-4)

    print("KERNEL_OK")
</pallas_src>

<mosaic_0001>
module attributes {stable_mosaic.version = 11 : i64} {
  func.func @_instance_cluster_kernel(%arg0: i32, %arg1: memref<1x256xf32, #tpu.memory_space<vmem>>, %arg2: memref<4x256xf32, #tpu.memory_space<vmem>>, %arg3: memref<1x1xf32, #tpu.memory_space<smem>>, %arg4: memref<4x8xf32, #tpu.memory_space<vmem>>) attributes {dimension_semantics = [#tpu.dimension_semantics<arbitrary>], iteration_bounds = array<i64: 1>, scalar_prefetch = 0 : i64, scratch_operands = 1 : i64, tpu.core_type = #tpu.core_type<tc>, window_params = [{transform_indices = @transform_0, window_bounds = array<i64: 1, 256>}, {transform_indices = @transform_1, window_bounds = array<i64: 4, 256>}, {transform_indices = @transform_2, window_bounds = array<i64: 1, 1>}]} {
    %c0_i32 = arith.constant 0 : i32
    %0 = arith.cmpi eq, %arg0, %c0_i32 : i32
    %1 = arith.extui %0 : i1 to i32
    %c0_i32_0 = arith.constant 0 : i32
    %2 = arith.cmpi ne, %1, %c0_i32_0 : i32
    scf.if %2 {
      %cst_12 = arith.constant 0.000000e+00 : f32
      %16 = vector.broadcast %cst_12 : f32 to vector<4x8xf32>
      %c0_13 = arith.constant 0 : index
      %c0_14 = arith.constant 0 : index
      %17 = vector.load %arg4[%c0_13, %c0_14] : memref<4x8xf32, #tpu.memory_space<vmem>>, vector<4x8xf32>
      tpu.vector_store %arg4[%c0_13, %c0_14], %16 {strides = array<i32>} : memref<4x8xf32, #tpu.memory_space<vmem>>, vector<4x8xf32>,
    } else {
    }
    %c0 = arith.constant 0 : index
    %c0_1 = arith.constant 0 : index
    %3 = vector.load %arg1[%c0, %c0_1] : memref<1x256xf32, #tpu.memory_space<vmem>>, vector<1x256xf32>
    %c0_2 = arith.constant 0 : index
    %c0_3 = arith.constant 0 : index
    %4 = vector.load %arg2[%c0_2, %c0_3] : memref<4x256xf32, #tpu.memory_space<vmem>>, vector<4x256xf32>
    %cst = arith.constant 1.000000e+00 : f32
    %5 = vector.broadcast %cst : f32 to vector<1x256xf32>
    %6 = arith.mulf %3, %3 : vector<1x256xf32>
    %cst_4 = arith.constant 0.000000e+00 : f32
    %7 = vector.broadcast %cst_4 : f32 to vector<5x256xf32>
    %8 = tpu.concatenate %5, %3, %6, %7 in 0 : vector<1x256xf32>, vector<1x256xf32>, vector<1x256xf32>, vector<5x256xf32> -> vector<8x256xf32>
    %c0_5 = arith.constant 0 : index
    %c0_6 = arith.constant 0 : index
    %9 = vector.load %arg4[%c0_5, %c0_6] : memref<4x8xf32, #tpu.memory_space<vmem>>, vector<4x8xf32>
    "tpu.trace_start"() <{level = 10 : i32, message = "kx,jx->kj"}> : () -> ()
    %cst_7 = arith.constant dense<0.000000e+00> : vector<4x8xf32>
    %10 = tpu.matmul %4, %8, %cst_7 {dimension_numbers = #tpu.dot_dimension_numbers<[1], [1], [0], [0], [0, 0, 1, 0], [], []>} : vector<4x256xf32>, vector<8x256xf32>, vector<4x8xf32> -> vector<4x8xf32>
    "tpu.trace_stop"() : () -> ()
    %11 = arith.addf %9, %10 : vector<4x8xf32>
    %c0_8 = arith.constant 0 : index
    %c0_9 = arith.constant 0 : index
    %12 = vector.load %arg4[%c0_8, %c0_9] : memref<4x8xf32, #tpu.memory_space<vmem>>, vector<4x8xf32>
    tpu.vector_store %arg4[%c0_8, %c0_9], %11 {strides = array<i32>} : memref<4x8xf32, #tpu.memory_space<vmem>>, vector<4x8xf32>,
    %c0_i32_10 = arith.constant 0 : i32
    %13 = arith.cmpi eq, %arg0, %c0_i32_10 : i32
    %14 = arith.extui %13 : i1 to i32
    %c0_i32_11 = arith.constant 0 : i32
    %15 = arith.cmpi ne, %14, %c0_i32_11 : i32
    scf.if %15 {
      %c0_12 = arith.constant 0 : index
      %c0_13 = arith.constant 0 : index
      %16 = vector.load %arg4[%c0_12, %c0_13] : memref<4x8xf32, #tpu.memory_space<vmem>>, vector<4x8xf32>
      %17 = vector.extract_strided_slice %16 {offsets = [0, 0], sizes = [4, 1], strides = [1, 1]} : vector<4x8xf32> to vector<4x1xf32>
      %18 = vector.extract_strided_slice %16 {offsets = [0, 1], sizes = [4, 1], strides = [1, 1]} : vector<4x8xf32> to vector<4x1xf32>
      %19 = vector.extract_strided_slice %16 {offsets = [0, 2], sizes = [4, 1], strides = [1, 1]} : vector<4x8xf32> to vector<4x1xf32>
      %cst_14 = arith.constant 1.000000e+00 : f32
      %20 = vector.broadcast %cst_14 : f32 to vector<4x1xf32>
      %21 = arith.maximumf %17, %20 : vector<4x1xf32>
      %22 = arith.divf %18, %21 : vector<4x1xf32>
      %23 = arith.mulf %18, %22 : vector<4x1xf32>
      %24 = arith.subf %19, %23 : vector<4x1xf32>
      %cst_15 = arith.constant 0.000000e+00 : f32
      %25 = vector.broadcast %cst_15 : f32 to vector<4x1xf32>
      %26 = arith.maximumf %24, %25 : vector<4x1xf32>
      %27 = math.sqrt %26 : vector<4x1xf32>
      %cst_16 = arith.constant 1.000000e-01 : f32
      %28 = vector.broadcast %cst_16 : f32 to vector<4x1xf32>
      %29 = arith.subf %27, %28 : vector<4x1xf32>
      %cst_17 = arith.constant 0.000000e+00 : f32
      %30 = vector.broadcast %cst_17 : f32 to vector<4x1xf32>
      %31 = arith.maximumf %29, %30 : vector<4x1xf32>
      %32 = arith.mulf %31, %31 : vector<4x1xf32>
      %33 = arith.divf %32, %21 : vector<4x1xf32>
      %34 = vector.shape_cast %33 : vector<4x1xf32> to vector<1x4x1xf32>
      %cst_18 = arith.constant dense<0.000000e+00> : vector<1xf32>
      %35 = vector.multi_reduction <add>, %34, %cst_18 [1, 2] : vector<1x4x1xf32> to vector<1xf32>
      %36 = vector.shape_cast %35 : vector<1xf32> to vector<1x1x1xf32>
      %37 = vector.extract %36[0, 0, 0] : f32 from vector<1x1x1xf32>
      %cst_19 = arith.constant 4.000000e+00 : f32
      %38 = arith.divf %37, %cst_19 : f32
      %39 = math.absf %22 : vector<4x1xf32>
      %40 = vector.shape_cast %39 : vector<4x1xf32> to vector<1x4x1xf32>
      %cst_20 = arith.constant dense<0.000000e+00> : vector<1xf32>
      %41 = vector.multi_reduction <add>, %40, %cst_20 [1, 2] : vector<1x4x1xf32> to vector<1xf32>
      %42 = vector.shape_cast %41 : vector<1xf32> to vector<1x1x1xf32>
      %43 = vector.extract %42[0, 0, 0] : f32 from vector<1x1x1xf32>
      %cst_21 = arith.constant 4.000000e+00 : f32
      %44 = arith.divf %43, %cst_21 : f32
      %45 = tpu.iota {dimensions = array<i32: 0>} : vector<4x4xi32>
      %46 = tpu.iota {dimensions = array<i32: 1>} : vector<4x4xi32>
      %47 = vector.shape_cast %22 : vector<4x1xf32> to vector<4x1xf32>
      %48 = vector.broadcast %47 : vector<4x1xf32> to vector<4x4xf32>
      %49 = arith.cmpi eq, %45, %46 : vector<4x4xi32>
      %cst_22 = arith.constant 0.000000e+00 : f32
      %50 = vector.broadcast %cst_22 : f32 to vector<4x4xf32>
      %51 = arith.select %49, %48, %50 : vector<4x4xi1>, vector<4x4xf32>
      %cst_23 = arith.constant dense<0.000000e+00> : vector<4xf32>
      %52 = vector.multi_reduction <add>, %51, %cst_23 [0] : vector<4x4xf32> to vector<4xf32>
      %53 = vector.shape_cast %52 : vector<4xf32> to vector<1x4xf32>
      %54 = vector.broadcast %53 : vector<1x4xf32> to vector<4x4xf32>
      %55 = arith.subf %48, %54 : vector<4x4xf32>
      %56 = math.absf %55 : vector<4x4xf32>
      %cst_24 = arith.constant 4.000000e-01 : f32
      %57 = vector.broadcast %cst_24 : f32 to vector<4x4xf32>
      %58 = arith.subf %57, %56 : vector<4x4xf32>
      %cst_25 = arith.constant 0.000000e+00 : f32
      %59 = vector.broadcast %cst_25 : f32 to vector<4x4xf32>
      %60 = arith.maximumf %58, %59 : vector<4x4xf32>
      %61 = arith.cmpi ne, %45, %46 : vector<4x4xi32>
      %62 = arith.extui %61 : vector<4x4xi1> to vector<4x4xi32>
      %63 = arith.sitofp %62 : vector<4x4xi32> to vector<4x4xf32>
      %64 = arith.mulf %60, %60 : vector<4x4xf32>
      %65 = arith.mulf %64, %63 : vector<4x4xf32>
      %66 = vector.shape_cast %65 : vector<4x4xf32> to vector<1x4x4xf32>
      %cst_26 = arith.constant dense<0.000000e+00> : vector<1xf32>
      %67 = vector.multi_reduction <add>, %66, %cst_26 [1, 2] : vector<1x4x4xf32> to vector<1xf32>
      %68 = vector.shape_cast %67 : vector<1xf32> to vector<1x1x1xf32>
      %69 = vector.extract %68[0, 0, 0] : f32 from vector<1x1x1xf32>
      %cst_27 = arith.constant 0.0833333358 : f32
      %70 = arith.mulf %69, %cst_27 : f32
      %cst_28 = arith.constant 1.000000e+00 : f32
      %71 = arith.mulf %cst_28, %38 : f32
      %cst_29 = arith.constant 1.000000e+00 : f32
      %72 = arith.mulf %cst_29, %70 : f32
      %73 = arith.addf %71, %72 : f32
      %cst_30 = arith.constant 1.000000e+00 : f32
      %74 = arith.mulf %cst_30, %44 : f32
      %75 = arith.addf %73, %74 : f32
      %c0_31 = arith.constant 0 : index
      %c0_32 = arith.constant 0 : index
      %76 = memref.load %arg3[%c0_31, %c0_32] : memref<1x1xf32, #tpu.memory_space<smem>>
      memref.store %75, %arg3[%c0_31, %c0_32] : memref<1x1xf32, #tpu.memory_space<smem>>
    } else {
    }
    return
  }
  func.func @transform_0(%arg0: i32) -> (i32, i32) {
    %c0_i32 = arith.constant 0 : i32
    %c0_i32_0 = arith.constant 0 : i32
    return %c0_i32, %arg0 : i32, i32
  }
  func.func @transform_1(%arg0: i32) -> (i32, i32) {
    %c0_i32 = arith.constant 0 : i32
    %c0_i32_0 = arith.constant 0 : i32
    return %c0_i32, %arg0 : i32, i32
  }
  func.func @transform_2(%arg0: i32) -> (i32, i32) {
    %c0_i32 = arith.constant 0 : i32
    %c0_i32_0 = arith.constant 0 : i32
    %c0_i32_1 = arith.constant 0 : i32
    return %c0_i32, %c0_i32_0 : i32, i32
  }
}

</mosaic_0001>

<llo_original>
// kernel: tpu_custom_call.1
$region0: #{tpu_custom_call.1}
  #allocation0 [shape = 'u32[]', space=smem, size = 0x4, offset = 0x4, fixed_abs, tag = 'smem constant byte address 0x4 - core index']
  #allocation1 [shape = 'u32[144,128]{1,0:T(1,128)}', space=vmem, size = 0x12000, scoped, tag = 'internal scratch']
  #allocation2 [shape = 'f32[4,8]{1,0:T(4,128)}', space=vmem, size = 0x800, scoped, tag = 'scratch operand']
  %s0 = inlined_call_operand.hbm [shape: f32[1,256], index: 0, kind: input, shape index: {}]
  %s1 = inlined_call_operand.hbm [shape: f32[4,256], index: 1, kind: input, shape index: {}]
  %s2 = inlined_call_operand.hbm [shape: f32[1,1], index: 2, kind: output, shape index: {}]
  %s3 = sld [smem:[#allocation0]]
  $region34: #{tpu_custom_call.1} parent=0
    _
  %s5 = ssub.s32 1, %s3
  %s6 = scalar_select 0, %s5, %s3
  $region1: #{tpu_custom_call.1} parent=0
    #allocation3 [shape = 'u8[1024]{0}', space=vmem, size = 0x400, scoped, tag = 'input window, operand 0, single buffered']
    #allocation4 [shape = 's32[1]{0}', space=sflag, size = 0x4, scoped, tag = 'scoped memory for tpu_custom_call.1']
    #allocation5 [shape = 's32[1]{0}', space=sflag, size = 0x4, scoped, tag = 'scoped memory for tpu_custom_call.1']
    #allocation6 [shape = 'u8[4096]{0}', space=vmem, size = 0x1000, scoped, tag = 'input window, operand 1, single buffered']
    #allocation7 [shape = 's32[1]{0}', space=sflag, size = 0x4, scoped, tag = 'scoped memory for tpu_custom_call.1']
    #allocation8 [shape = 'u8[512]{0}', space=smem, size = 0x200, scoped, tag = 'output window, operand 0, single buffered']
    %7 = vsyncpa [#allocation4], 0
    %8 = vsyncpa [#allocation7], 0
    %9 = vsyncpa [#allocation5], 0
    // Predicated region
    $region2: #{tpu_custom_call.1} parent=1 // pred_check
      _
    $region3: #{tpu_custom_call.1} parent=1 // pred_check_branch
      %11 = sbr.rel (0) target = $region5
    $region4: #{tpu_custom_call.1} parent=1 // pred_region
      %s13 = ssub.s32 32, 32
      %14 = vsyncadd [#allocation4], %s13
      %s16 = sshll.u32 [#allocation3], 4
      %s17 = int_to_ptr.vmem [resolvable:$true] %s16
      %19 = dma.hbm_to_vmem [thread:$0]  %s0, 32, %s17, [#allocation4]
    $region5: #{tpu_custom_call.1} parent=1 // pred_fallthru
      _
    // Predicated region
    $region6: #{tpu_custom_call.1} parent=1 // pred_check
      _
    $region7: #{tpu_custom_call.1} parent=1 // pred_check_branch
      %21 = sbr.rel (0) target = $region9
    $region8: #{tpu_custom_call.1} parent=1 // pred_region
      %s23 = ssub.s32 128, 128
      %24 = vsyncadd [#allocation7], %s23
      %s26 = sshll.u32 [#allocation6], 4
      %s27 = int_to_ptr.vmem [resolvable:$true] %s26
      %29 = dma.hbm_to_vmem [thread:$0]  %s1, 128, %s27, [#allocation7]
    $region9: #{tpu_custom_call.1} parent=1 // pred_fallthru
      _
    // Predicated region
    $region10: #{tpu_custom_call.1} parent=1 // pred_check
      _
    $region11: #{tpu_custom_call.1} parent=1 // pred_check_branch
      %31 = sbr.rel (0) target = $region13
    $region12: #{tpu_custom_call.1} parent=1 // pred_region
      %32 = dma.done [#allocation4], 32
    $region13: #{tpu_custom_call.1} parent=1 // pred_fallthru
      _
    // Predicated region
    $region14: #{tpu_custom_call.1} parent=1 // pred_check
      _
    $region15: #{tpu_custom_call.1} parent=1 // pred_check_branch
      %34 = sbr.rel (0) target = $region17
    $region16: #{tpu_custom_call.1} parent=1 // pred_region
      %35 = dma.done [#allocation7], 128
    $region17: #{tpu_custom_call.1} parent=1 // pred_fallthru
      _
    %p36 = scmp.eq.s32.totalorder 0, 0
    // Predicated region
    $region18: #{tpu_custom_call.1} parent=1 // pred_check
      %p37 = pneg %p36
    $region19: #{tpu_custom_call.1} parent=1 // pred_check_branch
      %39 = sbr.rel (%p37) target = $region21
    $region20: #{tpu_custom_call.1} parent=1 // pred_region
      %vm40 = vcmask 60416
      %41 = vst.msk [vmem:[#allocation2] sm:$0xf] %vm40, 0.0
    $region21: #{tpu_custom_call.1} parent=1 // pred_fallthru
      _
    %v42 = vld [vmem:[#allocation3] sm:$0x3]
    %v43 = vld [vmem:[#allocation6] sm:$0xff]
    %v44 = vmul.f32 %v42, %v42
    %v46 = vlaneseq
    %v47 = vshrl.u32 %v46, 7
    %v48 = vsub.s32 0, %v47
    %v49 = vrot.slane %v42, %v48
    %v50 = vlaneseq
    %v51 = vshrl.u32 %v50, 7
    %v52 = vsub.s32 1, %v51
    %v53 = vrot.slane %v42, %v52
    %v57 = vlaneseq
    %v58 = vshrl.u32 %v57, 7
    %v59 = vsub.s32 0, %v58
    %v60 = vrot.slane %v44, %v59
    %v61 = vlaneseq
    %v62 = vshrl.u32 %v61, 7
    %v63 = vsub.s32 1, %v62
    %v64 = vrot.slane %v44, %v63
    %vm67 = vcmask 1040384
    %v68 = vsel %vm67, 1.0, %v49
    %v69 = vsel %vm67, 1.0, %v53
    %vm70 = vcmask 1041408
    %v71 = vsel %vm70, %v68, %v60
    %v72 = vsel %vm70, %v69, %v64
    %vm73 = vcmask 1042432
    %v74 = vsel %vm73, %v71, 0.0
    %v75 = vsel %vm73, %v72, 0.0
    %v76 = vld [vmem:[#allocation2] sm:$0xf]
    %v78 = vcombine.high %v43, %v43
    %80 = vmatprep.subr.mxu0 %v75
    %81 = vmatpush1.xpose.msra.mxu0 %v74
    %82 = vmatprep.subr.mxu0 0.0
    %83 = vmatpush1.xpose.msra.mxu0 0.0
    %84 = vmatprep.subr.mxu0 0.0
    %85 = vmatpush1.xpose.msra.mxu0 0.0
    %86 = vmatprep.subr.mxu0 0.0
    %87 = vmatpush1.xpose.msra.mxu0 0.0
    %88 = vmatprep.subr.mxu0 0.0
    %89 = vmatpush1.xpose.msra.mxu0 0.0
    %90 = vmatprep.subr.mxu0 0.0
    %91 = vmatpush1.xpose.msra.mxu0 0.0
    %92 = vmatprep.subr.mxu0 0.0
    %93 = vmatpush1.xpose.msra.mxu0 0.0
    %94 = vmatprep.subr.mxu0 0.0
    %95 = vmatpush1.xpose.msra.mxu0 0.0
    %96 = vmatprep.subr.mxu0 0.0
    %97 = vmatpush1.xpose.msra.mxu0 0.0
    %98 = vmatprep.subr.mxu0 0.0
    %99 = vmatpush1.xpose.msra.mxu0 0.0
    %100 = vmatprep.subr.mxu0 0.0
    %101 = vmatpush1.xpose.msra.mxu0 0.0
    %102 = vmatprep.subr.mxu0 0.0
    %103 = vmatpush1.xpose.msra.mxu0 0.0
    %104 = vmatprep.subr.mxu0 0.0
    %105 = vmatpush1.xpose.msra.mxu0 0.0
    %106 = vmatprep.subr.mxu0 0.0
    %107 = vmatpush1.xpose.msra.mxu0 0.0
    %108 = vmatprep.subr.mxu0 0.0
    %109 = vmatpush1.xpose.msra.mxu0 0.0
    %110 = vmatprep.subr.mxu0 0.0
    %111 = vmatpush1.xpose.msra.mxu0 0.0
    %112 = vmatprep.subr.mxu0 0.0
    %113 = vmatpush1.xpose.msra.mxu0 0.0
    %114 = vmatprep.subr.mxu0 0.0
    %115 = vmatpush1.xpose.msra.mxu0 0.0
    %116 = vmatprep.subr.mxu0 0.0
    %117 = vmatpush1.xpose.msra.mxu0 0.0
    %118 = vmatprep.subr.mxu0 0.0
    %119 = vmatpush1.xpose.msra.mxu0 0.0
    %120 = vmatprep.subr.mxu0 0.0
    %121 = vmatpush1.xpose.msra.mxu0 0.0
    %122 = vmatprep.subr.mxu0 0.0
    %123 = vmatpush1.xpose.msra.mxu0 0.0
    %124 = vmatprep.subr.mxu0 0.0
    %125 = vmatpush1.xpose.msra.mxu0 0.0
    %126 = vmatprep.subr.mxu0 0.0
    %127 = vmatpush1.xpose.msra.mxu0 0.0
    %128 = vmatprep.subr.mxu0 0.0
    %129 = vmatpush1.xpose.msra.mxu0 0.0
    %130 = vmatprep.subr.mxu0 0.0
    %131 = vmatpush1.xpose.msra.mxu0 0.0
    %132 = vmatprep.subr.mxu0 0.0
    %133 = vmatpush1.xpose.msra.mxu0 0.0
    %134 = vmatprep.subr.mxu0 0.0
    %135 = vmatpush1.xpose.msra.mxu0 0.0
    %136 = vmatprep.subr.mxu0 0.0
    %137 = vmatpush1.xpose.msra.mxu0 0.0
    %138 = vmatprep.subr.mxu0 0.0
    %139 = vmatpush1.xpose.msra.mxu0 0.0
    %140 = vmatprep.subr.mxu0 0.0
    %141 = vmatpush1.xpose.msra.mxu0 0.0
    %142 = vmatprep.subr.mxu0 0.0
    %143 = vmatpush1.xpose.msra.mxu0 0.0
    %144 = vmatprep.mubr.f32.mxu0 %v78
    %145 = vmatmul.mubr.f32.gmra.mrb[0].mxu0 %v43
    %v146 = vpop.f32.mrb[0].mxu0
    %v147 = vadd.f32 0.0, %v146
    %v148 = vpop.f32.mrb[0].mxu0
    %149 = vdwg.mxu0
    %v150 = vadd.f32 %v76, %v147
    %vm151 = vcmask 60416
    %152 = vst.msk [vmem:[#allocation2] sm:$0xf] %vm151, %v150
    // Predicated region
    $region22: #{tpu_custom_call.1} parent=1 // pred_check
      %p153 = pneg %p36
    $region23: #{tpu_custom_call.1} parent=1 // pred_check_branch
      %155 = sbr.rel (%p153) target = $region25
    $region24: #{tpu_custom_call.1} parent=1 // pred_region
      %v156 = vld [vmem:[#allocation2] sm:$0xf]
      %v157 = vmax.f32 %v156, 1.0
      %159 = vrot.lane.b32.xlu0 %v157, 1
      %v160 = vpop.permute.xlu0 %159
      %v162 = vrcp.pop %v160
      %v163 = vmul.f32 %v156, %v162
      %v164 = vmul.f32 %v156, %v163
      %166 = vrot.lane.b32.xlu0 %v164, 1
      %v167 = vpop.permute.xlu0 %166
      %v169 = vsub.f32 %v156, %v167
      %v170 = vmax.f32 %v169, 0.0
      %v171 = vrsqrt.pop %v170
      %v172 = vmul.f32 %v170, %v171
      %vm173 = vcmp.eq.f32.partialorder %v170, inf
      %v174 = vsel %vm173, %v170, %v172
      %vm175 = vcmp.eq.f32.partialorder %v170, 0.0
      %v176 = vand.u32 %v170, 2147483648
      %v177 = vsel %vm175, %v176, %v174
      %v178 = vsub.f32 %v177, 0.1
      %v179 = vmax.f32 %v178, 0.0
      %v180 = vmul.f32 %v179, %v179
      %181 = vrot.lane.b32.xlu0 %v157, 2
      %v182 = vpop.permute.xlu0 %181
      %v184 = vrcp.pop %v182
      %v185 = vmul.f32 %v180, %v184
      %187 = vrot.lane.b32.xlu0 %v185, 126
      %v188 = vpop.permute.xlu0 %187
      %vm190 = vcmask 3072
      %v191 = vsel %vm190, %v188, 0.0
      %192 = vadd.xlane.f32.xlu0 %v191
      %v193 = vpop.xlane.xlu0 %192
      %v194 = vrot.slane %v193, 4
      %v195 = vadd.f32 %v193, %v194
      %v196 = vrot.slane %v195, 2
      %v197 = vadd.f32 %v195, %v196
      %v198 = vrot.slane %v197, 1
      %v199 = vadd.f32 %v197, %v198
      %s200 = vtos %v199
      %v201 = vrcp.pop 4.0
      %s202 = vtos %v201
      %s203 = smul.f32 %s200, %s202
      %v204 = vand.u32 2147483647, %v163
      %206 = vrot.lane.b32.xlu0 %v204, 127
      %v207 = vpop.permute.xlu0 %206
      %v209 = vsel %vm190, %v207, 0.0
      %210 = vadd.xlane.f32.xlu0 %v209
      %v211 = vpop.xlane.xlu0 %210
      %v212 = vrot.slane %v211, 4
      %v213 = vadd.f32 %v211, %v212
      %v214 = vrot.slane %v213, 2
      %v215 = vadd.f32 %v213, %v214
      %v216 = vrot.slane %v215, 1
      %v217 = vadd.f32 %v215, %v216
      %s218 = vtos %v217
      %v219 = vrcp.pop 4.0
      %s220 = vtos %v219
      %s221 = smul.f32 %s218, %s220
      %v222 = vlaneseq
      %v223 = vshrl.u32 %v222, 7
      %v224 = vlaneseq
      %v225 = vand.u32 %v224, 127
      %227 = vset.pattern.permute.xlu0 1
      %228 = vperm.xlu0 %227, %v163
      %v229 = vpop.permute.xlu0 %228
      %vm231 = vcmp.eq.s32.totalorder %v223, %v225
      %v232 = vsel %vm231, %v229, 0.0
      %vm233 = vcmask 27648
      %v234 = vsel %vm233, %v232, 0.0
      %v235 = vrot.slane %v234, 4
      %v236 = vadd.f32 %v234, %v235
      %v237 = vrot.slane %v236, 2
      %v238 = vadd.f32 %v236, %v237
      %v239 = vrot.slane %v238, 1
      %v240 = vadd.f32 %v238, %v239
      %v241 = vsub.f32 %v229, %v240
      %v242 = vand.u32 2147483647, %v241
      %v243 = vsub.f32 0.4, %v242
      %v244 = vmax.f32 %v243, 0.0
      %vm245 = vcmp.ne.s32.totalorder %v223, %v225
      %v246 = vsel %vm245, 1, 0
      %v247 = vcvt.s32.f32 %v246
      %v248 = vmul.f32 %v244, %v244
      %v249 = vmul.f32 %v248, %v247
      %v250 = vsel %vm233, %v249, 0.0
      %251 = vadd.xlane.f32.xlu0 %v250
      %v252 = vpop.xlane.xlu0 %251
      %v253 = vrot.slane %v252, 4
      %v254 = vadd.f32 %v252, %v253
      %v255 = vrot.slane %v254, 2
      %v256 = vadd.f32 %v254, %v255
      %v257 = vrot.slane %v256, 1
      %v258 = vadd.f32 %v256, %v257
      %s259 = vtos %v258
      %s260 = smul.f32 %s259, 0.083333336
      %s261 = sadd.f32 %s203, %s260
      %s262 = sadd.f32 %s261, %s221
      %s263 = scalar_lea.smem [#allocation8], 0
      %264 = sst [smem:[%s263]] %s262
    $region25: #{tpu_custom_call.1} parent=1 // pred_fallthru
      _
    // Predicated region
    $region26: #{tpu_custom_call.1} parent=1 // pred_check
      _
    $region27: #{tpu_custom_call.1} parent=1 // pred_check_branch
      %266 = sbr.rel (0) target = $region29
    $region28: #{tpu_custom_call.1} parent=1 // pred_region
      %s268 = ssub.s32 16, 16
      %269 = vsyncadd [#allocation5], %s268
      %272 = dma.smem_to_hbm [#allocation8], 16, %s2, [#allocation5]
    $region29: #{tpu_custom_call.1} parent=1 // pred_fallthru
      _
    // Predicated region
    $region30: #{tpu_custom_call.1} parent=1 // pred_check
      _
    $region31: #{tpu_custom_call.1} parent=1 // pred_check_branch
      %274 = sbr.rel (0) target = $region33
    $region32: #{tpu_custom_call.1} parent=1 // pred_region
      %275 = dma.done [#allocation5], 16
    $region33: #{tpu_custom_call.1} parent=1 // pred_fallthru
      _
    %276 = sfence
    %277 = vsyncpa [#allocation4], 1
    %278 = vsyncpa [#allocation7], 1
    %279 = vsyncpa [#allocation5], 1

</llo_original>
